<compile_context>
chip_gen: v7x
topology: tpu7x:2x2x1
jax: 0.10.0
libtpu: 0.0.40
codegen_flags: <defaults>
</compile_context>

<pallas_src>
import functools

import jax
import jax.numpy as jnp
from jax import lax
from jax.experimental import pallas as pl
from jax.experimental.pallas import tpu as pltpu


_MAX_ROW_BLOCK = 512                          # bigger row tiles -> closer to HBM roofline
_VMEM_LIMIT = 48 * 1024 * 1024                # explicit scoped-VMEM limit (fits v7x 64 MiB)
_PAR1 = pltpu.CompilerParams(dimension_semantics=("parallel",),
                             vmem_limit_bytes=_VMEM_LIMIT)


def _row_block(rows):
    if rows <= _MAX_ROW_BLOCK:
        return rows, 1
    return _MAX_ROW_BLOCK, pl.cdiv(rows, _MAX_ROW_BLOCK)


def _spec3(a):
    n, d = a.shape[1], a.shape[2]
    if a.shape[0] == 1:                       # batch-broadcast operand -> constant block
        return pl.BlockSpec((1, n, d), lambda i: (0, 0, 0))
    return pl.BlockSpec((1, n, d), lambda i: (i, 0, 0))


def _spec4(a):
    s1, s2, s3 = a.shape[1], a.shape[2], a.shape[3]
    if a.shape[0] == 1:
        return pl.BlockSpec((1, s1, s2, s3), lambda i: (0, 0, 0, 0))
    return pl.BlockSpec((1, s1, s2, s3), lambda i: (i, 0, 0, 0))


# ----------------------------------------------------------------------------
# In-kernel helpers
# ----------------------------------------------------------------------------
def _layernorm(x, g, b):
    mu = jnp.mean(x, axis=-1, keepdims=True)
    var = jnp.mean((x - mu) ** 2, axis=-1, keepdims=True)
    return (x - mu) * lax.rsqrt(var + 1e-5) * g + b


def _gelu(x):
    # exact GELU (erf form), matching torch.nn.GELU() default
    return 0.5 * x * (1.0 + lax.erf(x * 0.7071067811865476))


def _dot_nt(a, b):
    # a @ b.T without materializing a transpose: contract last dims of both.
    return lax.dot_general(a, b, (((1,), (1,)), ((), ())),
                           preferred_element_type=jnp.float32)


# ----------------------------------------------------------------------------
# Pallas kernels
# ----------------------------------------------------------------------------
def _ln_qkv_kernel(x_ref, g_ref, b_ref, w_ref, xn_ref, q_ref, k_ref, v_ref):
    # LayerNorm fused with the bias-free qkv projection.  The normalized rows are
    # also emitted (the residual add uses them); q/k/v are written as three
    # lane-dense bf16 (rows, dim) tensors -> no head-split transposes in JAX.
    d = x_ref.shape[-1]
    xn = _layernorm(x_ref[...], g_ref[...], b_ref[...])
    xn_ref[...] = xn
    qkv = jnp.dot(xn.astype(jnp.bfloat16), w_ref[...],
                  preferred_element_type=jnp.float32)
    q_ref[...] = qkv[:, :d].astype(q_ref.dtype)
    k_ref[...] = qkv[:, d:2 * d].astype(k_ref.dtype)
    v_ref[...] = qkv[:, 2 * d:].astype(v_ref.dtype)


def _proj_qkv_kv_kernel(x_ref, w1_ref, b1_ref, w2_ref, k_ref, v_ref):
    # proj_i followed by the k/v columns of qkv_i2 (the q column is never used).
    d = k_ref.shape[-1]
    h = (jnp.dot(x_ref[...], w1_ref[...], preferred_element_type=jnp.float32)
         + b1_ref[...])
    kv = jnp.dot(h.astype(jnp.bfloat16), w2_ref[...],
                 preferred_element_type=jnp.float32)
    k_ref[...] = kv[:, :d].astype(k_ref.dtype)
    v_ref[...] = kv[:, d:].astype(v_ref.dtype)


def _ln_mlp_res_kernel(x_ref, g_ref, b_ref, w1_ref, b1_ref, w2_ref, b2_ref, o_ref):
    # out = MLP(LayerNorm(x)) + x   (norm2 + fc1 + GELU + fc2 + residual, fused)
    x = x_ref[...]
    h = _layernorm(x, g_ref[...], b_ref[...])
    h = (jnp.dot(h.astype(jnp.bfloat16), w1_ref[...],
                 preferred_element_type=jnp.float32) + b1_ref[...])
    h = _gelu(h)
    y = (jnp.dot(h.astype(jnp.bfloat16), w2_ref[...],
                 preferred_element_type=jnp.float32) + b2_ref[...])
    o_ref[...] = y + x


def _ori_kernel(q_ref, k_ref, pp_ref, ori_ref, *, h, dh, scale):
    # Per-polar-bin |score| sums for the main-orientation statistic.  The raw
    # kernel<-x scores are recomputed later inside the fused attention kernel, so
    # they never round-trip HBM.  (The one-hot bin contraction is batched over the
    # query row, so it is not a clean single MXU matmul; the VPU/XLU have slack
    # here while the MXU runs q@k^T.)
    pp = pp_ref[0]                                         # (k_l, x_l) int32
    sels = [(pp == o).astype(jnp.float32) for o in range(8)]
    for hd in range(h):
        lo = hd * dh
        q_h = q_ref[0, :, lo:lo + dh]                      # bf16 (k_l, dh)
        k_h = k_ref[0, :, lo:lo + dh]                      # bf16 (x_l, dh)
        a = jnp.abs(scale * _dot_nt(q_h, k_h))             # f32 (k_l, x_l)
        cols = [jnp.sum(a * sel, axis=-1, keepdims=True) for sel in sels]
        ori_ref[0, hd] = jnp.concatenate(cols, axis=-1)    # (k_l, 8)


def _mha_kernel(q_ref, k_ref, v_ref, m_ref, *rest,
                h, dh, scale, fill, has_bias, has_proj, mask_t, bias_t):
    # Fully fused multi-head attention on packed (n, h*dh) operands:
    #   scale*q@k^T -> masked_fill -> (+bias) -> softmax -> @v -> (optional proj)
    # Heads are sliced from the refs in-kernel; the output is written as one
    # lane-dense (nq, h*dh) block.
    idx = 0
    bias_ref = None
    if has_bias:
        bias_ref = rest[idx]
        idx += 1
    if has_proj:
        pw_ref = rest[idx]
        pb_ref = rest[idx + 1]
        idx += 2
    o_ref = rest[idx]

    m2 = m_ref[0, 0].astype(jnp.float32)                   # bf16 mask -> f32
    if mask_t:
        m2 = m2.T                                          # in-kernel transpose (XLU)
    masked = m2 > 0.0

    outs = []
    for hd in range(h):
        lo = hd * dh
        q_h = q_ref[0, :, lo:lo + dh]                      # bf16 (nq, dh)
        k_h = k_ref[0, :, lo:lo + dh]                      # bf16 (nk, dh)
        v_h = v_ref[0, :, lo:lo + dh]                      # bf16 (nk, dh)
        s = scale * _dot_nt(q_h, k_h)                      # f32 (nq, nk)
        s = jnp.where(masked, jnp.float32(fill), s)        # masked_fill first (as ref)
        if has_bias:
            b2 = bias_ref[0, hd]                           # f32 (bq, bk)
            if bias_t:
                b2 = b2.T
            s = s + b2
        s = s - jnp.max(s, axis=-1, keepdims=True)
        p = jnp.exp(s)
        p = p / jnp.sum(p, axis=-1, keepdims=True)         # exact divide (f32)
        outs.append(jnp.dot(p.astype(jnp.bfloat16), v_h,
                            preferred_element_type=jnp.float32))
    o = jnp.concatenate(outs, axis=-1)                     # (nq, h*dh) lane-dense
    if has_proj:
        o = (jnp.dot(o.astype(jnp.bfloat16), pw_ref[...],
                     preferred_element_type=jnp.float32) + pb_ref[...])
    o_ref[0] = o.astype(o_ref.dtype)


# ----------------------------------------------------------------------------
# Pallas wrappers
# ----------------------------------------------------------------------------
def ln_qkv(x2, g, be, w):
    """x2: (rows, d) f32 -> (LayerNorm(x2) f32, q bf16, k bf16, v bf16)."""
    rows, d = x2.shape
    bm, gg = _row_block(rows)
    return pl.pallas_call(
        _ln_qkv_kernel,
        out_shape=(jax.ShapeDtypeStruct((rows, d), jnp.float32),
                   jax.ShapeDtypeStruct((rows, d), jnp.bfloat16),
                   jax.ShapeDtypeStruct((rows, d), jnp.bfloat16),
                   jax.ShapeDtypeStruct((rows, d), jnp.bfloat16)),
        grid=(gg,),
        in_specs=[
            pl.BlockSpec((bm, d), lambda i: (i, 0)),
            pl.BlockSpec((1, d), lambda i: (0, 0)),
            pl.BlockSpec((1, d), lambda i: (0, 0)),
            pl.BlockSpec((d, 3 * d), lambda i: (0, 0)),
        ],
        out_specs=[pl.BlockSpec((bm, d), lambda i: (i, 0)),
                   pl.BlockSpec((bm, d), lambda i: (i, 0)),
                   pl.BlockSpec((bm, d), lambda i: (i, 0)),
                   pl.BlockSpec((bm, d), lambda i: (i, 0))],
        compiler_params=_PAR1,
    )(x2.astype(jnp.float32),
      g.reshape(1, d).astype(jnp.float32),
      be.reshape(1, d).astype(jnp.float32),
      w.astype(jnp.bfloat16))


def proj_qkv_kv(x2, w1, b1, w2_full):
    """(x2 @ w1 + b1) @ w2[:, d:]  — fused proj_i -> qkv_i2, k/v columns only."""
    rows, d = x2.shape
    mid = w1.shape[-1]
    w2 = w2_full[:, d:]                     # (mid, 2d): skip the unused q columns
    bm, g = _row_block(rows)
    return pl.pallas_call(
        _proj_qkv_kv_kernel,
        out_shape=(jax.ShapeDtypeStruct((rows, d), jnp.bfloat16),
                   jax.ShapeDtypeStruct((rows, d), jnp.bfloat16)),
        grid=(g,),
        in_specs=[
            pl.BlockSpec((bm, d), lambda i: (i, 0)),
            pl.BlockSpec((d, mid), lambda i: (0, 0)),
            pl.BlockSpec((1, mid), lambda i: (0, 0)),
            pl.BlockSpec((mid, 2 * d), lambda i: (0, 0)),
        ],
        out_specs=[pl.BlockSpec((bm, d), lambda i: (i, 0)),
                   pl.BlockSpec((bm, d), lambda i: (i, 0))],
        compiler_params=_PAR1,
    )(x2.astype(jnp.bfloat16), w1.astype(jnp.bfloat16),
      b1.reshape(1, mid).astype(jnp.float32), w2.astype(jnp.bfloat16))


def ln_mlp_res(x2, g, be, w1, b1, w2, b2):
    """MLP(LayerNorm(x2)) + x2 — fused norm2 + fc1 + GELU + fc2 + residual."""
    rows, d = x2.shape
    hid = w1.shape[-1]
    bm, gg = _row_block(rows)
    return pl.pallas_call(
        _ln_mlp_res_kernel,
        out_shape=jax.ShapeDtypeStruct((rows, d), jnp.float32),
        grid=(gg,),
        in_specs=[
            pl.BlockSpec((bm, d), lambda i: (i, 0)),
            pl.BlockSpec((1, d), lambda i: (0, 0)),
            pl.BlockSpec((1, d), lambda i: (0, 0)),
            pl.BlockSpec((d, hid), lambda i: (0, 0)),
            pl.BlockSpec((1, hid), lambda i: (0, 0)),
            pl.BlockSpec((hid, d), lambda i: (0, 0)),
            pl.BlockSpec((1, d), lambda i: (0, 0)),
        ],
        out_specs=pl.BlockSpec((bm, d), lambda i: (i, 0)),
        compiler_params=_PAR1,
    )(x2.astype(jnp.float32),
      g.reshape(1, d).astype(jnp.float32),
      be.reshape(1, d).astype(jnp.float32),
      w1.astype(jnp.bfloat16), b1.reshape(1, hid).astype(jnp.float32),
      w2.astype(jnp.bfloat16), b2.reshape(1, d).astype(jnp.float32))


def kx_ori(q, k, pp, scale, num_heads):
    """Per-polar-bin |scaled score| sums (b, h, k_l, 8); scores stay in VMEM."""
    b, nq, dim = q.shape
    nk = k.shape[1]
    dh = dim // num_heads
    return pl.pallas_call(
        functools.partial(_ori_kernel, h=num_heads, dh=dh, scale=float(scale)),
        out_shape=jax.ShapeDtypeStruct((b, num_heads, nq, 8), jnp.float32),
        grid=(b,),
        in_specs=[pl.BlockSpec((1, nq, dim), lambda i: (i, 0, 0)),
                  pl.BlockSpec((1, nk, dim), lambda i: (i, 0, 0)),
                  pl.BlockSpec((1, nq, nk), lambda i: (i, 0, 0))],
        out_specs=pl.BlockSpec((1, num_heads, nq, 8), lambda i: (i, 0, 0, 0)),
        compiler_params=_PAR1,
    )(q.astype(jnp.bfloat16), k.astype(jnp.bfloat16), pp.astype(jnp.int32))


def mha(q, k, v, mask, *, num_heads, scale, fill, bias=None,
        proj_w=None, proj_b=None, mask_t=False, bias_t=False):
    """Fused attention on packed (b, n, dim) operands with optional bias and
    optional fused output projection.  Mask/bias transposes happen in-kernel."""
    b = max(q.shape[0], k.shape[0], mask.shape[0])
    nq, dim = q.shape[1], q.shape[2]
    dh = dim // num_heads
    in_specs = [_spec3(q), _spec3(k), _spec3(v), _spec4(mask)]
    args = [q.astype(jnp.bfloat16), k.astype(jnp.bfloat16),
            v.astype(jnp.bfloat16), mask.astype(jnp.bfloat16)]
    if bias is not None:
        in_specs.append(_spec4(bias))
        args.append(bias.astype(jnp.float32))
    has_proj = proj_w is not None
    if has_proj:
        in_specs.append(pl.BlockSpec((dim, dim), lambda i: (0, 0)))
        in_specs.append(pl.BlockSpec((1, dim), lambda i: (0, 0)))
        args.append(proj_w.astype(jnp.bfloat16))
        args.append(proj_b.reshape(1, dim).astype(jnp.float32))
    out_dtype = jnp.float32 if has_proj else jnp.bfloat16
    kern = functools.partial(
        _mha_kernel, h=num_heads, dh=dh, scale=float(scale), fill=float(fill),
        has_bias=bias is not None, has_proj=has_proj,
        mask_t=mask_t, bias_t=bias_t)
    return pl.pallas_call(
        kern,
        out_shape=jax.ShapeDtypeStruct((b, nq, dim), out_dtype),
        grid=(b,),
        in_specs=in_specs,
        out_specs=pl.BlockSpec((1, nq, dim), lambda i: (i, 0, 0)),
        compiler_params=_PAR1,
    )(*args)


# ----------------------------------------------------------------------------
# IPCA attention (forward semantics of the PyTorch module)
# ----------------------------------------------------------------------------
def ipca_forward(p, num_heads, q, k, v, k_q, k_k, k_v, i_q, i_k, i_v,
                 i_k_q, i_k_k, i_k_v, rd, polar_pos,
                 att_mask, i_att_mask, cross_att_mask):
    b, x_l, dim = q.shape
    k_l = k_q.shape[1]
    head_dim = dim // num_heads
    scale = head_dim ** (-0.5)

    # distance embedding: (b,k_l,x_l) -> (b,h,k_l,x_l)     (tiny plain-JAX gather)
    rd_emb = jnp.take(p["dis_embed"], rd.astype(jnp.int32), axis=0)
    rd_emb = jnp.transpose(rd_emb, (0, 3, 1, 2))

    # polar position clamp to [0, 7]
    pp = jnp.clip(polar_pos, 0, 7).astype(jnp.int32)        # (b,k_l,x_l)

    # per-bin |score| sums for the main orientation (no score HBM round-trip)
    ori_sum = kx_ori(k_q, k, pp, scale, num_heads)          # (b,h,k_l,8)

    # generate_main_orientation glue (argmax over 8 bins + embedding gathers)
    # TODO(synk): torch F.one_hot infers num_classes = max+1; fixed to 8 here.
    main_ori = jnp.argmax(ori_sum, axis=-1)                 # (b,h,k_l)
    npi = pp[:, None, :, :] - main_ori[..., None]
    npi = jnp.where(npi < 0, npi + 8, npi)
    new_polar = jnp.take(p["polar_emb"], npi, axis=0)[..., 0]
    bias_kx = (rd_emb + new_polar).astype(jnp.float32)      # (b,h,k_l,x_l)

    # --- kernel <- x path (masked_fill -1e6, then +bias; mask transposed in-kernel,
    #     proj fused into the attention kernel) ---
    k_out = mha(k_q, k, v, att_mask, num_heads=num_heads, scale=scale, fill=-1.0e6,
                bias=bias_kx, mask_t=True,
                proj_w=p["proj_w"], proj_b=p["proj_b"])

    # --- x path (kernel attention + cross image-kernel attention, both with proj) ---
    x_out1 = mha(q, k_k, k_v, att_mask, num_heads=num_heads, scale=scale, fill=-1.0e9,
                 bias=bias_kx, bias_t=True,
                 proj_w=p["proj_w"], proj_b=p["proj_b"])
    x_out2 = mha(q, i_k_k, i_k_v, cross_att_mask, num_heads=num_heads, scale=scale,
                 fill=-1.0e9, proj_w=p["proj_w"], proj_b=p["proj_b"])
    x_out = x_out1 + x_out2          # proj bias applied per branch, as in the reference

    # --- image-kernel <- image-x attention, then fused proj_i -> qkv_i2 (k/v only) ---
    i_k_out_h = mha(i_k_q, i_k, i_v, i_att_mask, num_heads=num_heads, scale=scale,
                    fill=-1.0e9, mask_t=True)
    num_ik = i_k_out_h.shape[1]
    i_k2_k, i_k2_v = proj_qkv_kv(i_k_out_h.reshape(b * num_ik, dim),
                                 p["proj_i_w"], p["proj_i_b"], p["qkv_i2_w"])
    i_k2_k = i_k2_k.reshape(b, num_ik, dim)
    i_k2_v = i_k2_v.reshape(b, num_ik, dim)

    # --- image-x <- refreshed image-kernel attention, proj_i2 fused ---
    i_x_out = mha(i_q, i_k2_k, i_k2_v, i_att_mask, num_heads=num_heads, scale=scale,
                  fill=-1.0e9, proj_w=p["proj_i2_w"], proj_b=p["proj_i2_b"])

    return x_out, k_out, i_x_out


# ----------------------------------------------------------------------------
# Block forward (norm -> IPCA -> residual -> MLP -> residual)
# ----------------------------------------------------------------------------
def block_forward(p, x, i_x, kx, rd, polar_pos, att_mask, i_att_mask,
                  cross_att_mask, num_heads):
    b, x_l, dim = x.shape
    k_l = kx.shape[1]
    n_i = i_x.shape[1]
    num_ik = p["kernel_token_i"].shape[1]

    # masks to bf16 once (half the DMA bytes of f32)
    att_mask = att_mask.astype(jnp.bfloat16)
    i_att_mask = i_att_mask.astype(jnp.bfloat16)
    cross_att_mask = cross_att_mask.astype(jnp.bfloat16)

    # --- fused LayerNorm(norm1) + qkv; x & kx share weights -> one call ---
    nx = b * x_l
    nk_rows = b * k_l
    xk_rows = jnp.concatenate([x.reshape(nx, dim), kx.reshape(nk_rows, dim)], axis=0)
    xk_n, q_all, k_all, v_all = ln_qkv(xk_rows, p["norm1_w"], p["norm1_b"],
                                       p["attn"]["qkv_w"])
    x_n = xk_n[:nx].reshape(b, x_l, dim)
    kx_n = xk_n[nx:].reshape(b, k_l, dim)
    q = q_all[:nx].reshape(b, x_l, dim)
    k = k_all[:nx].reshape(b, x_l, dim)
    v = v_all[:nx].reshape(b, x_l, dim)
    k_q = q_all[nx:].reshape(b, k_l, dim)
    k_k = k_all[nx:].reshape(b, k_l, dim)
    k_v = v_all[nx:].reshape(b, k_l, dim)

    # i_x & the learned image-kernel tokens share norm1_i / qkv_i.  The token rows
    # are batch-independent -> normalized/projected ONCE and broadcast through
    # constant index_maps in the attention kernels.
    ni = b * n_i
    i_rows = jnp.concatenate([i_x.reshape(ni, dim),
                              p["kernel_token_i"].reshape(num_ik, dim)], axis=0)
    i_n, iq_all, ik_all, iv_all = ln_qkv(i_rows, p["norm1_i_w"], p["norm1_i_b"],
                                         p["attn"]["qkv_i_w"])
    i_x_n = i_n[:ni].reshape(b, n_i, dim)
    i_q = iq_all[:ni].reshape(b, n_i, dim)
    i_k = ik_all[:ni].reshape(b, n_i, dim)
    i_v = iv_all[:ni].reshape(b, n_i, dim)
    i_k_q = iq_all[ni:].reshape(1, num_ik, dim)
    i_k_k = ik_all[ni:].reshape(1, num_ik, dim)
    i_k_v = iv_all[ni:].reshape(1, num_ik, dim)

    x_, kx_, i_x_ = ipca_forward(
        p["attn"], num_heads, q, k, v, k_q, k_k, k_v, i_q, i_k, i_v,
        i_k_q, i_k_k, i_k_v, rd, polar_pos,
        att_mask, i_att_mask, cross_att_mask)

    # residual adds use the NORMALIZED streams (the reference rebinds x/kx/i_x)
    x_res = x_n + x_
    kx_res = kx_n + kx_
    i_res = i_x_n + i_x_

    # fused LayerNorm(norm2) + MLP + residual; x / kx share weights -> one call
    xk2 = jnp.concatenate([x_res.reshape(nx, dim), kx_res.reshape(nk_rows, dim)],
                          axis=0)
    xk2_out = ln_mlp_res(xk2, p["norm2_w"], p["norm2_b"],
                         p["mlp_fc1_w"], p["mlp_fc1_b"],
                         p["mlp_fc2_w"], p["mlp_fc2_b"])
    x_out = xk2_out[:nx].reshape(b, x_l, dim)
    kx_out = xk2_out[nx:].reshape(b, k_l, dim)

    i2_out = ln_mlp_res(i_res.reshape(ni, dim),
                        p["norm2_i_w"], p["norm2_i_b"],
                        p["mlp_i_fc1_w"], p["mlp_i_fc1_b"],
                        p["mlp_i_fc2_w"], p["mlp_i_fc2_b"])
    i_x_out = i2_out.reshape(b, n_i, dim)

    return x_out, kx_out, i_x_out


# ----------------------------------------------------------------------------
# Deterministic parameter init (matmul weights stored bf16; LN/bias/embeds f32)
# ----------------------------------------------------------------------------
def init_params(key, dim, num_heads, num_ik, mlp_hidden):
    keys = iter(jax.random.split(key, 40))
    bf = jnp.bfloat16

    def nrm(shape, scale=0.02, dtype=jnp.float32):
        return (scale * jax.random.normal(next(keys), shape)).astype(dtype)

    return {
        "norm1_w": 1.0 + nrm((dim,)), "norm1_b": nrm((dim,)),
        "norm1_i_w": 1.0 + nrm((dim,)), "norm1_i_b": nrm((dim,)),
        "norm2_w": 1.0 + nrm((dim,)), "norm2_b": nrm((dim,)),
        "norm2_i_w": 1.0 + nrm((dim,)), "norm2_i_b": nrm((dim,)),
        "kernel_token_i": nrm((1, num_ik, dim), 1.0),
        "attn": {
            "polar_emb": nrm((8, 1), 1.0),
            "dis_embed": nrm((66, num_heads), 1.0),
            "qkv_w": nrm((dim, 3 * dim), dtype=bf),      # stored (in, out); no bias
            "qkv_i_w": nrm((dim, 3 * dim), dtype=bf),
            "qkv_i2_w": nrm((dim, 3 * dim), dtype=bf),
            "proj_w": nrm((dim, dim), dtype=bf), "proj_b": nrm((dim,)),
            "proj_i_w": nrm((dim, dim), dtype=bf), "proj_i_b": nrm((dim,)),
            "proj_i2_w": nrm((dim, dim), dtype=bf), "proj_i2_b": nrm((dim,)),
        },
        "mlp_fc1_w": nrm((dim, mlp_hidden), dtype=bf), "mlp_fc1_b": nrm((mlp_hidden,)),
        "mlp_fc2_w": nrm((mlp_hidden, dim), dtype=bf), "mlp_fc2_b": nrm((dim,)),
        "mlp_i_fc1_w": nrm((dim, mlp_hidden), dtype=bf), "mlp_i_fc1_b": nrm((mlp_hidden,)),
        "mlp_i_fc2_w": nrm((mlp_hidden, dim), dtype=bf), "mlp_i_fc2_b": nrm((dim,)),
    }


# ----------------------------------------------------------------------------
if __name__ == "__main__":
    dim = 32
    num_heads = 4
    num_ik = 8
    mlp_hidden = int(dim * 4.0)
    b = 2
    x_l = 16      # x sequence length
    k_l = 8       # kernel token length
    n_i = 16      # i_x sequence length

    root = jax.random.PRNGKey(0)
    kp, k1, k2, k3, k4, k5, k6, k7, k8 = jax.random.split(root, 9)

    params = init_params(kp, dim, num_heads, num_ik, mlp_hidden)

    x = jax.random.normal(k1, (b, x_l, dim), jnp.float32)
    i_x = jax.random.normal(k2, (b, n_i, dim), jnp.float32)
    kx = jax.random.normal(k3, (b, k_l, dim), jnp.float32)
    rd = jax.random.randint(k4, (b, k_l, x_l), 0, 66)
    polar_pos = jax.random.randint(k5, (b, k_l, x_l), -1, 10)
    att_mask = jax.random.bernoulli(k6, 0.2, (b, 1, x_l, k_l))
    i_att_mask = jax.random.bernoulli(k7, 0.2, (b, 1, n_i, num_ik))
    cross_att_mask = jax.random.bernoulli(k8, 0.2, (b, 1, x_l, num_ik))

    x_out, kx_out, ix_out = block_forward(
        params, x, i_x, kx, rd, polar_pos, att_mask, i_att_mask,
        cross_att_mask, num_heads,
    )
    jax.block_until_ready((x_out, kx_out, ix_out))

    assert x_out.shape == (b, x_l, dim)
    assert kx_out.shape == (b, k_l, dim)
    assert ix_out.shape == (b, n_i, dim)
    assert bool(jnp.all(jnp.isfinite(x_out)))
    assert bool(jnp.all(jnp.isfinite(kx_out)))
    assert bool(jnp.all(jnp.isfinite(ix_out)))
    print("KERNEL_OK")
</pallas_src>

<mosaic_0001>
module attributes {stable_mosaic.version = 11 : i64} {
  func.func @_ln_qkv_kernel(%arg0: i32, %arg1: memref<48x32xf32, #tpu.memory_space<vmem>>, %arg2: memref<1x32xf32, #tpu.memory_space<vmem>>, %arg3: memref<1x32xf32, #tpu.memory_space<vmem>>, %arg4: memref<32x96xbf16, #tpu.memory_space<vmem>>, %arg5: memref<48x32xf32, #tpu.memory_space<vmem>>, %arg6: memref<48x32xbf16, #tpu.memory_space<vmem>>, %arg7: memref<48x32xbf16, #tpu.memory_space<vmem>>, %arg8: memref<48x32xbf16, #tpu.memory_space<vmem>>) attributes {dimension_semantics = [#tpu.dimension_semantics<parallel>], iteration_bounds = array<i64: 1>, scalar_prefetch = 0 : i64, scratch_operands = 0 : i64, tpu.core_type = #tpu.core_type<tc>, window_params = [{transform_indices = @transform_0, window_bounds = array<i64: 48, 32>}, {pipeline_mode = #tpu.pipeline_mode<synchronous>, transform_indices = @transform_1, window_bounds = array<i64: 1, 32>}, {pipeline_mode = #tpu.pipeline_mode<synchronous>, transform_indices = @transform_2, window_bounds = array<i64: 1, 32>}, {pipeline_mode = #tpu.pipeline_mode<synchronous>, transform_indices = @transform_3, window_bounds = array<i64: 32, 96>}, {transform_indices = @transform_4, window_bounds = array<i64: 48, 32>}, {transform_indices = @transform_5, window_bounds = array<i64: 48, 32>}, {transform_indices = @transform_6, window_bounds = array<i64: 48, 32>}, {transform_indices = @transform_7, window_bounds = array<i64: 48, 32>}]} {
    %c0 = arith.constant 0 : index
    %c0_0 = arith.constant 0 : index
    %0 = vector.load %arg1[%c0, %c0_0] : memref<48x32xf32, #tpu.memory_space<vmem>>, vector<48x32xf32>
    %c0_1 = arith.constant 0 : index
    %c0_2 = arith.constant 0 : index
    %1 = vector.load %arg2[%c0_1, %c0_2] : memref<1x32xf32, #tpu.memory_space<vmem>>, vector<1x32xf32>
    %c0_3 = arith.constant 0 : index
    %c0_4 = arith.constant 0 : index
    %2 = vector.load %arg3[%c0_3, %c0_4] : memref<1x32xf32, #tpu.memory_space<vmem>>, vector<1x32xf32>
    %cst = arith.constant dense<0.000000e+00> : vector<48xf32>
    %3 = vector.multi_reduction <add>, %0, %cst [1] : vector<48x32xf32> to vector<48xf32>
    %4 = vector.shape_cast %3 : vector<48xf32> to vector<48x1xf32>
    %cst_5 = arith.constant 3.200000e+01 : f32
    %5 = vector.broadcast %cst_5 : f32 to vector<48x1xf32>
    %6 = arith.divf %4, %5 : vector<48x1xf32>
    %7 = vector.broadcast %6 : vector<48x1xf32> to vector<48x32xf32>
    %8 = arith.subf %0, %7 : vector<48x32xf32>
    %9 = arith.mulf %8, %8 : vector<48x32xf32>
    %cst_6 = arith.constant dense<0.000000e+00> : vector<48xf32>
    %10 = vector.multi_reduction <add>, %9, %cst_6 [1] : vector<48x32xf32> to vector<48xf32>
    %11 = vector.shape_cast %10 : vector<48xf32> to vector<48x1xf32>
    %cst_7 = arith.constant 3.200000e+01 : f32
    %12 = vector.broadcast %cst_7 : f32 to vector<48x1xf32>
    %13 = arith.divf %11, %12 : vector<48x1xf32>
    %14 = vector.broadcast %6 : vector<48x1xf32> to vector<48x32xf32>
    %15 = arith.subf %0, %14 : vector<48x32xf32>
    %cst_8 = arith.constant 9.99999974E-6 : f32
    %16 = vector.broadcast %cst_8 : f32 to vector<48x1xf32>
    %17 = arith.addf %13, %16 : vector<48x1xf32>
    %18 = math.rsqrt %17 : vector<48x1xf32>
    %19 = vector.broadcast %18 : vector<48x1xf32> to vector<48x32xf32>
    %20 = arith.mulf %15, %19 : vector<48x32xf32>
    %21 = vector.broadcast %1 : vector<1x32xf32> to vector<48x32xf32>
    %22 = arith.mulf %20, %21 : vector<48x32xf32>
    %23 = vector.broadcast %2 : vector<1x32xf32> to vector<48x32xf32>
    %24 = arith.addf %22, %23 : vector<48x32xf32>
    %c0_9 = arith.constant 0 : index
    %c0_10 = arith.constant 0 : index
    %25 = vector.load %arg5[%c0_9, %c0_10] : memref<48x32xf32, #tpu.memory_space<vmem>>, vector<48x32xf32>
    tpu.vector_store %arg5[%c0_9, %c0_10], %24 {strides = array<i32>} : memref<48x32xf32, #tpu.memory_space<vmem>>, vector<48x32xf32>,
    %26 = arith.truncf %24 : vector<48x32xf32> to vector<48x32xbf16>
    %c0_11 = arith.constant 0 : index
    %c0_12 = arith.constant 0 : index
    %27 = vector.load %arg4[%c0_11, %c0_12] : memref<32x96xbf16, #tpu.memory_space<vmem>>, vector<32x96xbf16>
    %cst_13 = arith.constant dense<0.000000e+00> : vector<48x96xf32>
    %28 = tpu.matmul %26, %27, %cst_13 {dimension_numbers = #tpu.dot_dimension_numbers<[1], [0], [0], [1], [0, 0, 1, 1], [], []>} : vector<48x32xbf16>, vector<32x96xbf16>, vector<48x96xf32> -> vector<48x96xf32>
    %29 = vector.extract_strided_slice %28 {offsets = [0, 0], sizes = [48, 32], strides = [1, 1]} : vector<48x96xf32> to vector<48x32xf32>
    %30 = arith.truncf %29 : vector<48x32xf32> to vector<48x32xbf16>
    %c0_14 = arith.constant 0 : index
    %c0_15 = arith.constant 0 : index
    %31 = vector.load %arg6[%c0_14, %c0_15] : memref<48x32xbf16, #tpu.memory_space<vmem>>, vector<48x32xbf16>
    tpu.vector_store %arg6[%c0_14, %c0_15], %30 {strides = array<i32>} : memref<48x32xbf16, #tpu.memory_space<vmem>>, vector<48x32xbf16>,
    %32 = vector.extract_strided_slice %28 {offsets = [0, 32], sizes = [48, 32], strides = [1, 1]} : vector<48x96xf32> to vector<48x32xf32>
    %33 = arith.truncf %32 : vector<48x32xf32> to vector<48x32xbf16>
    %c0_16 = arith.constant 0 : index
    %c0_17 = arith.constant 0 : index
    %34 = vector.load %arg7[%c0_16, %c0_17] : memref<48x32xbf16, #tpu.memory_space<vmem>>, vector<48x32xbf16>
    tpu.vector_store %arg7[%c0_16, %c0_17], %33 {strides = array<i32>} : memref<48x32xbf16, #tpu.memory_space<vmem>>, vector<48x32xbf16>,
    %35 = vector.extract_strided_slice %28 {offsets = [0, 64], sizes = [48, 32], strides = [1, 1]} : vector<48x96xf32> to vector<48x32xf32>
    %36 = arith.truncf %35 : vector<48x32xf32> to vector<48x32xbf16>
    %c0_18 = arith.constant 0 : index
    %c0_19 = arith.constant 0 : index
    %37 = vector.load %arg8[%c0_18, %c0_19] : memref<48x32xbf16, #tpu.memory_space<vmem>>, vector<48x32xbf16>
    tpu.vector_store %arg8[%c0_18, %c0_19], %36 {strides = array<i32>} : memref<48x32xbf16, #tpu.memory_space<vmem>>, vector<48x32xbf16>,
    return
  }
  func.func @transform_0(%arg0: i32) -> (i32, i32) {
    %c0_i32 = arith.constant 0 : i32
    %c0_i32_0 = arith.constant 0 : i32
    return %arg0, %c0_i32 : i32, i32
  }
  func.func @transform_1(%arg0: i32) -> (i32, i32) {
    %c0_i32 = arith.constant 0 : i32
    %c0_i32_0 = arith.constant 0 : i32
    %c0_i32_1 = arith.constant 0 : i32
    return %c0_i32, %c0_i32_0 : i32, i32
  }
  func.func @transform_2(%arg0: i32) -> (i32, i32) {
    %c0_i32 = arith.constant 0 : i32
    %c0_i32_0 = arith.constant 0 : i32
    %c0_i32_1 = arith.constant 0 : i32
    return %c0_i32, %c0_i32_0 : i32, i32
  }
  func.func @transform_3(%arg0: i32) -> (i32, i32) {
    %c0_i32 = arith.constant 0 : i32
    %c0_i32_0 = arith.constant 0 : i32
    %c0_i32_1 = arith.constant 0 : i32
    return %c0_i32, %c0_i32_0 : i32, i32
  }
  func.func @transform_4(%arg0: i32) -> (i32, i32) {
    %c0_i32 = arith.constant 0 : i32
    %c0_i32_0 = arith.constant 0 : i32
    return %arg0, %c0_i32 : i32, i32
  }
  func.func @transform_5(%arg0: i32) -> (i32, i32) {
    %c0_i32 = arith.constant 0 : i32
    %c0_i32_0 = arith.constant 0 : i32
    return %arg0, %c0_i32 : i32, i32
  }
  func.func @transform_6(%arg0: i32) -> (i32, i32) {
    %c0_i32 = arith.constant 0 : i32
    %c0_i32_0 = arith.constant 0 : i32
    return %arg0, %c0_i32 : i32, i32
  }
  func.func @transform_7(%arg0: i32) -> (i32, i32) {
    %c0_i32 = arith.constant 0 : i32
    %c0_i32_0 = arith.constant 0 : i32
    return %arg0, %c0_i32 : i32, i32
  }
}

</mosaic_0001>

<llo_original>
// kernel: tpu_custom_call.1
$region0: #{tpu_custom_call.1}
  #allocation0 [shape = 'u32[]', space=smem, size = 0x4, offset = 0x4, fixed_abs, tag = 'smem constant byte address 0x4 - core index']
  #allocation1 [shape = 'u32[144,128]{1,0:T(1,128)}', space=vmem, size = 0x12000, scoped, tag = 'internal scratch']
  %s0 = inlined_call_operand.vmem [shape: f32[48,32], index: 0, kind: input, shape index: {}]
  %s1 = inlined_call_operand.vmem [shape: f32[1,32], index: 1, kind: input, shape index: {}]
  %s2 = inlined_call_operand.vmem [shape: f32[1,32], index: 2, kind: input, shape index: {}]
  %s3 = inlined_call_operand.vmem [shape: bf16[32,96], index: 3, kind: input, shape index: {}]
  %s4 = inlined_call_operand.vmem [shape: f32[48,32], index: 4, kind: output, shape index: {0}]
  %s5 = inlined_call_operand.vmem [shape: bf16[48,32], index: 5, kind: output, shape index: {1}]
  %s6 = inlined_call_operand.vmem [shape: bf16[48,32], index: 6, kind: output, shape index: {2}]
  %s7 = inlined_call_operand.vmem [shape: bf16[48,32], index: 7, kind: output, shape index: {3}]
  %8 = xla_tuple %s4, %s5, %s6, %s7
  %s9 = sld [smem:[#allocation0]]
  $region50: #{tpu_custom_call.1} parent=0
    _
  %s11 = ssub.s32 1, %s9
  %s12 = scalar_select 0, %s11, %s9
  // Predicated region
  $region2: #{tpu_custom_call.1} parent=0 // pred_check
    _
  $region3: #{tpu_custom_call.1} parent=0 // pred_check_branch
    %14 = sbr.rel (0) target = $region5
  $region4: #{tpu_custom_call.1} parent=0 // pred_region
    _
  $region5: #{tpu_custom_call.1} parent=0 // pred_fallthru
    _
  // Predicated region
  $region6: #{tpu_custom_call.1} parent=0 // pred_check
    _
  $region7: #{tpu_custom_call.1} parent=0 // pred_check_branch
    %16 = sbr.rel (0) target = $region9
  $region8: #{tpu_custom_call.1} parent=0 // pred_region
    _
  $region9: #{tpu_custom_call.1} parent=0 // pred_fallthru
    _
  // Predicated region
  $region10: #{tpu_custom_call.1} parent=0 // pred_check
    _
  $region11: #{tpu_custom_call.1} parent=0 // pred_check_branch
    %18 = sbr.rel (0) target = $region13
  $region12: #{tpu_custom_call.1} parent=0 // pred_region
    _
  $region13: #{tpu_custom_call.1} parent=0 // pred_fallthru
    _
  // Predicated region
  $region14: #{tpu_custom_call.1} parent=0 // pred_check
    _
  $region15: #{tpu_custom_call.1} parent=0 // pred_check_branch
    %20 = sbr.rel (0) target = $region17
  $region16: #{tpu_custom_call.1} parent=0 // pred_region
    _
  $region17: #{tpu_custom_call.1} parent=0 // pred_fallthru
    _
  %v22 = vld [vmem:[%s0] sm:$0xff]
  %v23 = vld [vmem:[%s0 + $0x8] sm:$0xff]
  %v24 = vld [vmem:[%s0 + $0x10] sm:$0xff]
  %v25 = vld [vmem:[%s0 + $0x18] sm:$0xff]
  %v26 = vld [vmem:[%s0 + $0x20] sm:$0xff]
  %v27 = vld [vmem:[%s0 + $0x28] sm:$0xff]
  %v28 = vld [vmem:[%s1] sm:$0x1]
  %v29 = vld [vmem:[%s2] sm:$0x1]
  %vm30 = vcmask 261120
  %v31 = vsel %vm30, %v22, 0.0
  %32 = vadd.xlane.f32.xlu0 %v31
  %v33 = vpop.xlane.xlu0 %32
  %v34 = vsel %vm30, %v23, 0.0
  %35 = vadd.xlane.f32.xlu0 %v34
  %v36 = vpop.xlane.xlu0 %35
  %v37 = vsel %vm30, %v24, 0.0
  %38 = vadd.xlane.f32.xlu0 %v37
  %v39 = vpop.xlane.xlu0 %38
  %v40 = vsel %vm30, %v25, 0.0
  %41 = vadd.xlane.f32.xlu0 %v40
  %v42 = vpop.xlane.xlu0 %41
  %v43 = vsel %vm30, %v26, 0.0
  %44 = vadd.xlane.f32.xlu0 %v43
  %v45 = vpop.xlane.xlu0 %44
  %v46 = vsel %vm30, %v27, 0.0
  %47 = vadd.xlane.f32.xlu0 %v46
  %v48 = vpop.xlane.xlu0 %47
  %v49 = vrcp.pop 32.0
  %v50 = vmul.f32 %v33, %v49
  %v51 = vmul.f32 %v36, %v49
  %v52 = vmul.f32 %v39, %v49
  %v53 = vmul.f32 %v42, %v49
  %v54 = vmul.f32 %v45, %v49
  %v55 = vmul.f32 %v48, %v49
  %v56 = vsub.f32 %v22, %v50
  %v57 = vsub.f32 %v23, %v51
  %v58 = vsub.f32 %v24, %v52
  %v59 = vsub.f32 %v25, %v53
  %v60 = vsub.f32 %v26, %v54
  %v61 = vsub.f32 %v27, %v55
  %v62 = vmul.f32 %v56, %v56
  %v63 = vmul.f32 %v57, %v57
  %v64 = vmul.f32 %v58, %v58
  %v65 = vmul.f32 %v59, %v59
  %v66 = vmul.f32 %v60, %v60
  %v67 = vmul.f32 %v61, %v61
  %v68 = vsel %vm30, %v62, 0.0
  %69 = vadd.xlane.f32.xlu0 %v68
  %v70 = vpop.xlane.xlu0 %69
  %v71 = vsel %vm30, %v63, 0.0
  %72 = vadd.xlane.f32.xlu0 %v71
  %v73 = vpop.xlane.xlu0 %72
  %v74 = vsel %vm30, %v64, 0.0
  %75 = vadd.xlane.f32.xlu0 %v74
  %v76 = vpop.xlane.xlu0 %75
  %v77 = vsel %vm30, %v65, 0.0
  %78 = vadd.xlane.f32.xlu0 %v77
  %v79 = vpop.xlane.xlu0 %78
  %v80 = vsel %vm30, %v66, 0.0
  %81 = vadd.xlane.f32.xlu0 %v80
  %v82 = vpop.xlane.xlu0 %81
  %v83 = vsel %vm30, %v67, 0.0
  %84 = vadd.xlane.f32.xlu0 %v83
  %v85 = vpop.xlane.xlu0 %84
  %v86 = vmul.f32 %v70, %v49
  %v87 = vmul.f32 %v73, %v49
  %v88 = vmul.f32 %v76, %v49
  %v89 = vmul.f32 %v79, %v49
  %v90 = vmul.f32 %v82, %v49
  %v91 = vmul.f32 %v85, %v49
  %v92 = vadd.f32 %v86, 1e-05
  %v93 = vadd.f32 %v87, 1e-05
  %v94 = vadd.f32 %v88, 1e-05
  %v95 = vadd.f32 %v89, 1e-05
  %v96 = vadd.f32 %v90, 1e-05
  %v97 = vadd.f32 %v91, 1e-05
  %v98 = vrsqrt.pop %v92
  %v99 = vrsqrt.pop %v93
  %v100 = vrsqrt.pop %v94
  %v101 = vrsqrt.pop %v95
  %v102 = vrsqrt.pop %v96
  %v103 = vrsqrt.pop %v97
  %v104 = vmul.f32 %v56, %v98
  %v105 = vmul.f32 %v57, %v99
  %v106 = vmul.f32 %v58, %v100
  %v107 = vmul.f32 %v59, %v101
  %v108 = vmul.f32 %v60, %v102
  %v109 = vmul.f32 %v61, %v103
  %v111 = vlaneseq
  %v112 = vshrl.u32 %v111, 7
  %v113 = vsub.s32 0, %v112
  %v114 = vrot.slane %v28, %v113
  %v116 = vmul.f32 %v104, %v114
  %v117 = vmul.f32 %v105, %v114
  %v118 = vmul.f32 %v106, %v114
  %v119 = vmul.f32 %v107, %v114
  %v120 = vmul.f32 %v108, %v114
  %v121 = vmul.f32 %v109, %v114
  %v123 = vlaneseq
  %v124 = vshrl.u32 %v123, 7
  %v125 = vsub.s32 0, %v124
  %v126 = vrot.slane %v29, %v125
  %v128 = vadd.f32 %v116, %v126
  %v129 = vadd.f32 %v117, %v126
  %v130 = vadd.f32 %v118, %v126
  %v131 = vadd.f32 %v119, %v126
  %v132 = vadd.f32 %v120, %v126
  %v133 = vadd.f32 %v121, %v126
  %134 = vst.msk [vmem:[%s4] sm:$0xff] %vm30, %v128
  %135 = vst.msk [vmem:[%s4 + $0x8] sm:$0xff] %vm30, %v129
  %136 = vst.msk [vmem:[%s4 + $0x10] sm:$0xff] %vm30, %v130
  %137 = vst.msk [vmem:[%s4 + $0x18] sm:$0xff] %vm30, %v131
  %138 = vst.msk [vmem:[%s4 + $0x20] sm:$0xff] %vm30, %v132
  %139 = vst.msk [vmem:[%s4 + $0x28] sm:$0xff] %vm30, %v133
  %v140 = vpack.c.bf16 %v129, %v128
  %v141 = vpack.c.bf16 %v131, %v130
  %v142 = vpack.c.bf16 %v133, %v132
  %v143 = vld [vmem:[%s3] sm:$0xf]
  %v144 = vld [vmem:[%s3 + $0x4] sm:$0xf]
  %v145 = vld [vmem:[%s3 + $0x8] sm:$0xf]
  %v146 = vld [vmem:[%s3 + $0xc] sm:$0xf]
  %v151 = vunpack.c.l.b16 %v143
  %v152 = vunpack.c.l.b16 %v144
  %v153 = vunpack.c.l.b16 %v145
  %v154 = vunpack.c.l.b16 %v146
  %v155 = vpack.c.b16 %v152, %v151
  %v156 = vpack.c.b16 %v154, %v153
  %v160 = vsel %vm30, %v140, 0
  %v163 = vsel %vm30, %v141, 0
  %v166 = vsel %vm30, %v142, 0
  %168 = vmatprep.subr.bf16.mxu0 0
  %169 = vmatpush1.bf16.msra.mxu0 %v155
  %170 = vmatprep.subr.bf16.mxu0 0
  %171 = vmatpush1.bf16.msra.mxu0 %v156
  %172 = vmatprep.subr.bf16.mxu0 0
  %173 = vmatpush1.bf16.msra.mxu0 0
  %174 = vmatprep.subr.bf16.mxu0 0
  %175 = vmatpush1.bf16.msra.mxu0 0
  %176 = vmatprep.subr.bf16.mxu0 0
  %177 = vmatpush1.bf16.msra.mxu0 0
  %178 = vmatprep.subr.bf16.mxu0 0
  %179 = vmatpush1.bf16.msra.mxu0 0
  %180 = vmatprep.subr.bf16.mxu0 0
  %181 = vmatpush1.bf16.msra.mxu0 0
  %182 = vmatprep.subr.bf16.mxu0 0
  %183 = vmatpush1.bf16.msra.mxu0 0
  %184 = vmatprep.subr.bf16.mxu0 0
  %185 = vmatpush1.bf16.msra.mxu0 0
  %186 = vmatprep.subr.bf16.mxu0 0
  %187 = vmatpush1.bf16.msra.mxu0 0
  %188 = vmatprep.subr.bf16.mxu0 0
  %189 = vmatpush1.bf16.msra.mxu0 0
  %190 = vmatprep.subr.bf16.mxu0 0
  %191 = vmatpush1.bf16.msra.mxu0 0
  %192 = vmatprep.subr.bf16.mxu0 0
  %193 = vmatpush1.bf16.msra.mxu0 0
  %194 = vmatprep.subr.bf16.mxu0 0
  %195 = vmatpush1.bf16.msra.mxu0 0
  %196 = vmatprep.subr.bf16.mxu0 0
  %197 = vmatpush1.bf16.msra.mxu0 0
  %198 = vmatprep.subr.bf16.mxu0 0
  %199 = vmatpush1.bf16.msra.mxu0 0
  %200 = vmatprep.mubr.bf16.mxu0 0
  %201 = vmatmul.mubr.bf16.gmra.mrb[0].mxu0 %v160
  %v202 = vpop.f32.mrb[0].mxu0
  %v203 = vadd.f32 0.0, %v202
  %v204 = vpop.f32.mrb[0].mxu0
  %v205 = vpop.f32.mrb[0].mxu0
  %v206 = vadd.f32 0.0, %v205
  %v207 = vpop.f32.mrb[0].mxu0
  %208 = vmatprep.mubr.bf16.mxu0 0
  %209 = vmatmul.mubr.bf16.gmra.mrb[0].mxu0 %v163
  %v210 = vpop.f32.mrb[0].mxu0
  %v211 = vadd.f32 0.0, %v210
  %v212 = vpop.f32.mrb[0].mxu0
  %v213 = vpop.f32.mrb[0].mxu0
  %v214 = vadd.f32 0.0, %v213
  %v215 = vpop.f32.mrb[0].mxu0
  %216 = vmatprep.mubr.bf16.mxu0 0
  %217 = vmatmul.mubr.bf16.gmra.mrb[0].mxu0 %v166
  %v218 = vpop.f32.mrb[0].mxu0
  %v219 = vadd.f32 0.0, %v218
  %v220 = vpop.f32.mrb[0].mxu0
  %v221 = vpop.f32.mrb[0].mxu0
  %v222 = vadd.f32 0.0, %v221
  %v223 = vpop.f32.mrb[0].mxu0
  %224 = vdwg.mxu0
  %v225 = vpack.c.bf16 %v206, %v203
  %v226 = vpack.c.bf16 %v214, %v211
  %v227 = vpack.c.bf16 %v222, %v219
  %v231 = vunpack.c.l.b16 %v225
  %v232 = vunpack.c.h.b16 %v225
  %v233 = vunpack.c.l.b16 %v226
  %v234 = vunpack.c.h.b16 %v226
  %v235 = vunpack.c.l.b16 %v227
  %v236 = vunpack.c.h.b16 %v227
  %v237 = vpack.c.b16 %v231, %v231
  %v238 = vpack.c.b16 %v232, %v232
  %v239 = vpack.c.b16 %v233, %v233
  %v240 = vpack.c.b16 %v234, %v234
  %v241 = vpack.c.b16 %v235, %v235
  %v242 = vpack.c.b16 %v236, %v236
  %vm249 = vcmask 257024
  %250 = vst.msk [vmem:[%s5] sm:$0xf] %vm249, %v237
  %251 = vst.msk [vmem:[%s5 + $0x4] sm:$0xf] %vm249, %v238
  %252 = vst.msk [vmem:[%s5 + $0x8] sm:$0xf] %vm249, %v239
  %253 = vst.msk [vmem:[%s5 + $0xc] sm:$0xf] %vm249, %v240
  %254 = vst.msk [vmem:[%s5 + $0x10] sm:$0xf] %vm249, %v241
  %255 = vst.msk [vmem:[%s5 + $0x14] sm:$0xf] %vm249, %v242
  %256 = vrot.lane.b32.xlu0 %v237, 96
  %v257 = vpop.permute.xlu0 %256
  %258 = vrot.lane.b32.xlu0 %v238, 96
  %v259 = vpop.permute.xlu0 %258
  %260 = vrot.lane.b32.xlu0 %v239, 96
  %v261 = vpop.permute.xlu0 %260
  %262 = vrot.lane.b32.xlu0 %v240, 96
  %v263 = vpop.permute.xlu0 %262
  %264 = vrot.lane.b32.xlu0 %v241, 96
  %v265 = vpop.permute.xlu0 %264
  %266 = vrot.lane.b32.xlu0 %v242, 96
  %v267 = vpop.permute.xlu0 %266
  %274 = vst.msk [vmem:[%s6] sm:$0xf] %vm249, %v257
  %275 = vst.msk [vmem:[%s6 + $0x4] sm:$0xf] %vm249, %v259
  %276 = vst.msk [vmem:[%s6 + $0x8] sm:$0xf] %vm249, %v261
  %277 = vst.msk [vmem:[%s6 + $0xc] sm:$0xf] %vm249, %v263
  %278 = vst.msk [vmem:[%s6 + $0x10] sm:$0xf] %vm249, %v265
  %279 = vst.msk [vmem:[%s6 + $0x14] sm:$0xf] %vm249, %v267
  %280 = vrot.lane.b32.xlu0 %v237, 64
  %v281 = vpop.permute.xlu0 %280
  %282 = vrot.lane.b32.xlu0 %v238, 64
  %v283 = vpop.permute.xlu0 %282
  %284 = vrot.lane.b32.xlu0 %v239, 64
  %v285 = vpop.permute.xlu0 %284
  %286 = vrot.lane.b32.xlu0 %v240, 64
  %v287 = vpop.permute.xlu0 %286
  %288 = vrot.lane.b32.xlu0 %v241, 64
  %v289 = vpop.permute.xlu0 %288
  %290 = vrot.lane.b32.xlu0 %v242, 64
  %v291 = vpop.permute.xlu0 %290
  %298 = vst.msk [vmem:[%s7] sm:$0xf] %vm249, %v281
  %299 = vst.msk [vmem:[%s7 + $0x4] sm:$0xf] %vm249, %v283
  %300 = vst.msk [vmem:[%s7 + $0x8] sm:$0xf] %vm249, %v285
  %301 = vst.msk [vmem:[%s7 + $0xc] sm:$0xf] %vm249, %v287
  %302 = vst.msk [vmem:[%s7 + $0x10] sm:$0xf] %vm249, %v289
  %303 = vst.msk [vmem:[%s7 + $0x14] sm:$0xf] %vm249, %v291
  // Predicated region
  $region18: #{tpu_custom_call.1} parent=0 // pred_check
    _
  $region19: #{tpu_custom_call.1} parent=0 // pred_check_branch
    %305 = sbr.rel (0) target = $region21
  $region20: #{tpu_custom_call.1} parent=0 // pred_region
    _
  $region21: #{tpu_custom_call.1} parent=0 // pred_fallthru
    _
  // Predicated region
  $region22: #{tpu_custom_call.1} parent=0 // pred_check
    _
  $region23: #{tpu_custom_call.1} parent=0 // pred_check_branch
    %307 = sbr.rel (0) target = $region25
  $region24: #{tpu_custom_call.1} parent=0 // pred_region
    _
  $region25: #{tpu_custom_call.1} parent=0 // pred_fallthru
    _
  // Predicated region
  $region26: #{tpu_custom_call.1} parent=0 // pred_check
    _
  $region27: #{tpu_custom_call.1} parent=0 // pred_check_branch
    %309 = sbr.rel (0) target = $region29
  $region28: #{tpu_custom_call.1} parent=0 // pred_region
    _
  $region29: #{tpu_custom_call.1} parent=0 // pred_fallthru
    _
  // Predicated region
  $region30: #{tpu_custom_call.1} parent=0 // pred_check
    _
  $region31: #{tpu_custom_call.1} parent=0 // pred_check_branch
    %311 = sbr.rel (0) target = $region33
  $region32: #{tpu_custom_call.1} parent=0 // pred_region
    _
  $region33: #{tpu_custom_call.1} parent=0 // pred_fallthru
    _
  // Predicated region
  $region34: #{tpu_custom_call.1} parent=0 // pred_check
    _
  $region35: #{tpu_custom_call.1} parent=0 // pred_check_branch
    %313 = sbr.rel (0) target = $region37
  $region36: #{tpu_custom_call.1} parent=0 // pred_region
    _
  $region37: #{tpu_custom_call.1} parent=0 // pred_fallthru
    _
  // Predicated region
  $region38: #{tpu_custom_call.1} parent=0 // pred_check
    _
  $region39: #{tpu_custom_call.1} parent=0 // pred_check_branch
    %315 = sbr.rel (0) target = $region41
  $region40: #{tpu_custom_call.1} parent=0 // pred_region
    _
  $region41: #{tpu_custom_call.1} parent=0 // pred_fallthru
    _
  // Predicated region
  $region42: #{tpu_custom_call.1} parent=0 // pred_check
    _
  $region43: #{tpu_custom_call.1} parent=0 // pred_check_branch
    %317 = sbr.rel (0) target = $region45
  $region44: #{tpu_custom_call.1} parent=0 // pred_region
    _
  $region45: #{tpu_custom_call.1} parent=0 // pred_fallthru
    _
  // Predicated region
  $region46: #{tpu_custom_call.1} parent=0 // pred_check
    _
  $region47: #{tpu_custom_call.1} parent=0 // pred_check_branch
    %319 = sbr.rel (0) target = $region49
  $region48: #{tpu_custom_call.1} parent=0 // pred_region
    _
  $region49: #{tpu_custom_call.1} parent=0 // pred_fallthru
    _

</llo_original>
